<compile_context>
chip_gen: v7x
topology: tpu7x:2x2x1
jax: 0.10.0
libtpu: 0.0.40
codegen_flags: <defaults>
</compile_context>

<pallas_src>
import jax
import jax.numpy as jnp
import numpy as np
from jax.experimental import pallas as pl
from jax.experimental.pallas import tpu as pltpu


def _round_up(x, m):
    return ((x + m - 1) // m) * m


def _cdiv(a, b):
    return -(-a // b)


def _pick_tm(m_rows, block_m):
    """Balanced row tile: minimise zero-row padding, keep >=2 grid steps."""
    min_tiles = 2 if m_rows > 8 else 1          # v7x megacore coverage
    n_tiles = max(_cdiv(m_rows, block_m), min_tiles)
    return _round_up(_cdiv(m_rows, n_tiles), 8)


def _transition_kernel(x_ref, scale_ref, shift_ref, w_ref, o_ref):
    # x_ref:     (TM, 4*Cin_p)  rows = flattened (n, h/2, w/2); the last axis
    #                           packs the 2x2 window as 4 lane-aligned C_in
    #                           chunks (dy, dx) major.
    # scale_ref: (1, Cin_p) f32 folded BN scale (0 in padded lanes)
    # shift_ref: (1, Cin_p) f32 folded BN shift (0 in padded lanes)
    # w_ref:     (Cin_p, Cp)    1x1 conv weight with the 1/4 avg-pool factor
    #                           pre-folded; zero padded.
    # o_ref:     (TM, Cp)
    cin = w_ref.shape[0]
    scale = scale_ref[...]
    shift = shift_ref[...]
    # BatchNorm (inference, folded) + ReLU per 2x2 sub-pixel, window-summed on
    # the VPU (replaces the 4x-tiled weight -> 4x fewer MXU FLOPs).
    s = jnp.maximum(x_ref[:, 0:cin].astype(jnp.float32) * scale + shift, 0.0)
    for i in range(1, 4):  # static unroll over the 2x2 window
        xi = x_ref[:, i * cin:(i + 1) * cin].astype(jnp.float32)
        s = s + jnp.maximum(xi * scale + shift, 0.0)
    # 1x1 conv + 2x2 average pool (1/4 folded into w) as one MXU contraction.
    y = jnp.dot(s.astype(w_ref.dtype), w_ref[...],
                preferred_element_type=jnp.float32)
    o_ref[...] = y.astype(o_ref.dtype)


def _fold_params(gamma, beta, running_mean, running_var, conv_w, eps,
                 cin_p, cp, matmul_dtype):
    """Fold BN into per-channel scale/shift; fold avg-pool 1/4 into weight."""
    c_out, c_in = conv_w.shape[0], conv_w.shape[1]
    scale = (gamma.astype(jnp.float32)
             / jnp.sqrt(running_var.astype(jnp.float32) + eps))
    shift = beta.astype(jnp.float32) - running_mean.astype(jnp.float32) * scale
    w = conv_w.reshape(c_out, c_in).T.astype(jnp.float32) * 0.25  # (C_in, C_out)
    if cin_p != c_in:
        scale = jnp.pad(scale, (0, cin_p - c_in))
        shift = jnp.pad(shift, (0, cin_p - c_in))
    if cin_p != c_in or cp != c_out:
        w = jnp.pad(w, ((0, cin_p - c_in), (0, cp - c_out)))
    return (scale.reshape(1, cin_p), shift.reshape(1, cin_p),
            w.astype(matmul_dtype))


def _run_packed(x2, c_out, out_dtype, scale, shift, w, block_m):
    """x2: (M, 4*Cin_p) packed rows; returns (M, C_out)."""
    M, K = x2.shape
    cin_p = K // 4
    cp = w.shape[1]

    TM = _pick_tm(M, block_m)
    Mp = _round_up(M, TM)
    if Mp != M:
        x2 = jnp.pad(x2, ((0, Mp - M), (0, 0)))

    # Explicit scoped-VMEM budget (double-buffered blocks + headroom for the
    # in-kernel f32 temporaries), capped below v7x's 64 MiB physical VMEM.
    isz = lambda a: jnp.dtype(a).itemsize
    est = 2 * (TM * K * isz(x2.dtype)
               + cin_p * cp * isz(w.dtype)
               + TM * cp * isz(out_dtype)
               + 2 * cin_p * 4)
    vmem_limit = int(min(max(2 * est, 32 * 1024 * 1024), 48 * 1024 * 1024))

    out = pl.pallas_call(
        _transition_kernel,
        out_shape=jax.ShapeDtypeStruct((Mp, cp), out_dtype),
        grid_spec=pltpu.PrefetchScalarGridSpec(
            num_scalar_prefetch=0,
            grid=(Mp // TM,),
            in_specs=[
                pl.BlockSpec((TM, K), lambda m: (m, 0)),
                pl.BlockSpec((1, cin_p), lambda m: (0, 0)),   # fetched once
                pl.BlockSpec((1, cin_p), lambda m: (0, 0)),   # fetched once
                pl.BlockSpec((cin_p, cp), lambda m: (0, 0)),  # fetched once
            ],
            out_specs=pl.BlockSpec((TM, cp), lambda m: (m, 0)),
        ),
        compiler_params=pltpu.CompilerParams(
            dimension_semantics=("parallel",),
            vmem_limit_bytes=vmem_limit),
    )(x2, scale, shift, w)
    return out[:M, :c_out]


def transition_forward(x_nchw, gamma, beta, running_mean, running_var, conv_w,
                       eps=1e-5, matmul_dtype=jnp.bfloat16, block_m=256):
    """Pallas implementation of _Transition.forward (NCHW in, NCHW out)."""
    N, C_in, H, W = x_nchw.shape
    C_out = conv_w.shape[0]
    assert H % 2 == 0 and W % 2 == 0
    H2, W2 = H // 2, W // 2
    cin_p = _round_up(C_in, 128)
    cp = _round_up(C_out, 128)
    out_dtype = x_nchw.dtype

    x = x_nchw
    if jnp.dtype(matmul_dtype) == jnp.dtype(jnp.bfloat16) and \
            jnp.dtype(x.dtype) != jnp.dtype(jnp.bfloat16):
        x = x.astype(jnp.bfloat16)  # cast first: halves the transpose write
    # Single transpose merging NCHW->NHWC with the 2x2 space-to-depth.
    x = x.reshape(N, C_in, H2, 2, W2, 2)
    x = jnp.transpose(x, (0, 2, 4, 3, 5, 1))          # (N, H2, W2, 2, 2, C_in)
    if cin_p != C_in:
        x = jnp.pad(x, ((0, 0),) * 5 + ((0, cin_p - C_in),))
    x2 = x.reshape(N * H2 * W2, 4 * cin_p)

    scale, shift, w = _fold_params(gamma, beta, running_mean, running_var,
                                   conv_w, eps, cin_p, cp, matmul_dtype)
    y = _run_packed(x2, C_out, out_dtype, scale, shift, w, block_m)
    y = y.reshape(N, H2, W2, C_out)
    return jnp.transpose(y, (0, 3, 1, 2))             # NCHW


def transition_forward_nhwc(x_nhwc, gamma, beta, running_mean, running_var,
                            conv_w, eps=1e-5, matmul_dtype=jnp.bfloat16,
                            block_m=256):
    """Channels-last entry point: no NCHW<->NHWC transposes at all."""
    N, H, W, C_in = x_nhwc.shape
    C_out = conv_w.shape[0]
    assert H % 2 == 0 and W % 2 == 0
    H2, W2 = H // 2, W // 2
    cin_p = _round_up(C_in, 128)
    cp = _round_up(C_out, 128)
    out_dtype = x_nhwc.dtype

    x = x_nhwc
    if jnp.dtype(matmul_dtype) == jnp.dtype(jnp.bfloat16) and \
            jnp.dtype(x.dtype) != jnp.dtype(jnp.bfloat16):
        x = x.astype(jnp.bfloat16)
    x = x.reshape(N, H2, 2, W2, 2, C_in)
    x = jnp.transpose(x, (0, 1, 3, 2, 4, 5))          # (N, H2, W2, 2, 2, C_in)
    if cin_p != C_in:
        x = jnp.pad(x, ((0, 0),) * 5 + ((0, cin_p - C_in),))
    x2 = x.reshape(N * H2 * W2, 4 * cin_p)

    scale, shift, w = _fold_params(gamma, beta, running_mean, running_var,
                                   conv_w, eps, cin_p, cp, matmul_dtype)
    y = _run_packed(x2, C_out, out_dtype, scale, shift, w, block_m)
    return y.reshape(N, H2, W2, C_out)


def transition_reference(x, gamma, beta, running_mean, running_var, conv_w,
                         eps=1e-5):
    """Pure-JAX reference matching the PyTorch module (NCHW)."""
    scale = gamma / jnp.sqrt(running_var + eps)
    shift = beta - running_mean * scale
    xn = jnp.maximum(x * scale[None, :, None, None]
                     + shift[None, :, None, None], 0.0)
    w2d = conv_w.reshape(conv_w.shape[0], conv_w.shape[1])          # (C_out, C_in)
    y = jnp.einsum('nchw,oc->nohw', xn, w2d)                        # 1x1 conv
    N, O, Hh, Ww = y.shape
    y = y.reshape(N, O, Hh // 2, 2, Ww // 2, 2).mean(axis=(3, 5))   # avgpool 2x2
    return y


if __name__ == "__main__":
    # Small shapes consistent with the module: in_planes=4, out_planes=2.
    N, C_in, H, W = 2, 4, 16, 16
    C_out = 2

    key = jax.random.PRNGKey(0)
    k_x, k_g, k_b, k_m, k_v, k_w = jax.random.split(key, 6)

    x = jax.random.normal(k_x, (N, C_in, H, W), dtype=jnp.float32)
    gamma = jax.random.uniform(k_g, (C_in,), jnp.float32, 0.5, 1.5)
    beta = 0.1 * jax.random.normal(k_b, (C_in,), jnp.float32)
    running_mean = 0.1 * jax.random.normal(k_m, (C_in,), jnp.float32)
    running_var = jax.random.uniform(k_v, (C_in,), jnp.float32, 0.5, 1.5)
    conv_w = jax.random.normal(k_w, (C_out, C_in, 1, 1), jnp.float32) / np.sqrt(C_in)

    ref = transition_reference(x, gamma, beta, running_mean, running_var, conv_w)

    # f32 operand path (strict numerical check).
    out_f32 = transition_forward(x, gamma, beta, running_mean, running_var,
                                 conv_w, matmul_dtype=jnp.float32)
    out_f32 = jax.block_until_ready(out_f32)
    assert out_f32.shape == (N, C_out, H // 2, W // 2), out_f32.shape
    np.testing.assert_allclose(np.asarray(out_f32), np.asarray(ref),
                               rtol=1e-5, atol=1e-5)

    # Default path: bf16 operands (native MXU dtype on v5e/v6e/v7x), f32 acc.
    out_bf16 = transition_forward(x, gamma, beta, running_mean, running_var,
                                  conv_w)
    out_bf16 = jax.block_until_ready(out_bf16)
    assert out_bf16.shape == (N, C_out, H // 2, W // 2), out_bf16.shape
    np.testing.assert_allclose(np.asarray(out_bf16), np.asarray(ref),
                               rtol=5e-2, atol=1e-1)

    # NHWC-native entry point (skips the NCHW<->NHWC transposes).
    out_nhwc = transition_forward_nhwc(jnp.transpose(x, (0, 2, 3, 1)), gamma,
                                       beta, running_mean, running_var, conv_w)
    out_nhwc = jax.block_until_ready(out_nhwc)
    np.testing.assert_allclose(
        np.asarray(jnp.transpose(out_nhwc, (0, 3, 1, 2))), np.asarray(ref),
        rtol=5e-2, atol=1e-1)

    print("KERNEL_OK")
</pallas_src>

<mosaic_0001>
module attributes {stable_mosaic.version = 11 : i64} {
  func.func @_transition_kernel(%arg0: i32, %arg1: memref<64x512xf32, #tpu.memory_space<vmem>>, %arg2: memref<1x128xf32, #tpu.memory_space<vmem>>, %arg3: memref<1x128xf32, #tpu.memory_space<vmem>>, %arg4: memref<128x128xf32, #tpu.memory_space<vmem>>, %arg5: memref<64x128xf32, #tpu.memory_space<vmem>>) attributes {dimension_semantics = [#tpu.dimension_semantics<parallel>], iteration_bounds = array<i64: 2>, scalar_prefetch = 0 : i64, scratch_operands = 0 : i64, tpu.core_type = #tpu.core_type<tc>, window_params = [{transform_indices = @transform_0, window_bounds = array<i64: 64, 512>}, {pipeline_mode = #tpu.pipeline_mode<synchronous>, transform_indices = @transform_1, window_bounds = array<i64: 1, 128>}, {pipeline_mode = #tpu.pipeline_mode<synchronous>, transform_indices = @transform_2, window_bounds = array<i64: 1, 128>}, {pipeline_mode = #tpu.pipeline_mode<synchronous>, transform_indices = @transform_3, window_bounds = array<i64: 128, 128>}, {transform_indices = @transform_4, window_bounds = array<i64: 64, 128>}]} {
    %c0 = arith.constant 0 : index
    %c0_0 = arith.constant 0 : index
    %0 = vector.load %arg2[%c0, %c0_0] : memref<1x128xf32, #tpu.memory_space<vmem>>, vector<1x128xf32>
    %c0_1 = arith.constant 0 : index
    %c0_2 = arith.constant 0 : index
    %1 = vector.load %arg3[%c0_1, %c0_2] : memref<1x128xf32, #tpu.memory_space<vmem>>, vector<1x128xf32>
    %c0_3 = arith.constant 0 : index
    %c0_4 = arith.constant 0 : index
    %2 = vector.load %arg1[%c0_3, %c0_4] : memref<64x512xf32, #tpu.memory_space<vmem>>, vector<64x128xf32>
    %3 = vector.broadcast %0 : vector<1x128xf32> to vector<64x128xf32>
    %4 = arith.mulf %2, %3 : vector<64x128xf32>
    %5 = vector.broadcast %1 : vector<1x128xf32> to vector<64x128xf32>
    %6 = arith.addf %4, %5 : vector<64x128xf32>
    %cst = arith.constant 0.000000e+00 : f32
    %7 = vector.broadcast %cst : f32 to vector<64x128xf32>
    %8 = arith.maximumf %6, %7 : vector<64x128xf32>
    %c0_5 = arith.constant 0 : index
    %c128 = arith.constant 128 : index
    %9 = vector.load %arg1[%c0_5, %c128] : memref<64x512xf32, #tpu.memory_space<vmem>>, vector<64x128xf32>
    %10 = vector.broadcast %0 : vector<1x128xf32> to vector<64x128xf32>
    %11 = arith.mulf %9, %10 : vector<64x128xf32>
    %12 = vector.broadcast %1 : vector<1x128xf32> to vector<64x128xf32>
    %13 = arith.addf %11, %12 : vector<64x128xf32>
    %cst_6 = arith.constant 0.000000e+00 : f32
    %14 = vector.broadcast %cst_6 : f32 to vector<64x128xf32>
    %15 = arith.maximumf %13, %14 : vector<64x128xf32>
    %16 = arith.addf %8, %15 : vector<64x128xf32>
    %c0_7 = arith.constant 0 : index
    %c256 = arith.constant 256 : index
    %17 = vector.load %arg1[%c0_7, %c256] : memref<64x512xf32, #tpu.memory_space<vmem>>, vector<64x128xf32>
    %18 = vector.broadcast %0 : vector<1x128xf32> to vector<64x128xf32>
    %19 = arith.mulf %17, %18 : vector<64x128xf32>
    %20 = vector.broadcast %1 : vector<1x128xf32> to vector<64x128xf32>
    %21 = arith.addf %19, %20 : vector<64x128xf32>
    %cst_8 = arith.constant 0.000000e+00 : f32
    %22 = vector.broadcast %cst_8 : f32 to vector<64x128xf32>
    %23 = arith.maximumf %21, %22 : vector<64x128xf32>
    %24 = arith.addf %16, %23 : vector<64x128xf32>
    %c0_9 = arith.constant 0 : index
    %c384 = arith.constant 384 : index
    %25 = vector.load %arg1[%c0_9, %c384] : memref<64x512xf32, #tpu.memory_space<vmem>>, vector<64x128xf32>
    %26 = vector.broadcast %0 : vector<1x128xf32> to vector<64x128xf32>
    %27 = arith.mulf %25, %26 : vector<64x128xf32>
    %28 = vector.broadcast %1 : vector<1x128xf32> to vector<64x128xf32>
    %29 = arith.addf %27, %28 : vector<64x128xf32>
    %cst_10 = arith.constant 0.000000e+00 : f32
    %30 = vector.broadcast %cst_10 : f32 to vector<64x128xf32>
    %31 = arith.maximumf %29, %30 : vector<64x128xf32>
    %32 = arith.addf %24, %31 : vector<64x128xf32>
    %c0_11 = arith.constant 0 : index
    %c0_12 = arith.constant 0 : index
    %33 = vector.load %arg4[%c0_11, %c0_12] : memref<128x128xf32, #tpu.memory_space<vmem>>, vector<128x128xf32>
    %cst_13 = arith.constant dense<0.000000e+00> : vector<64x128xf32>
    %34 = tpu.matmul %32, %33, %cst_13 {dimension_numbers = #tpu.dot_dimension_numbers<[1], [0], [0], [1], [0, 0, 1, 1], [], []>} : vector<64x128xf32>, vector<128x128xf32>, vector<64x128xf32> -> vector<64x128xf32>
    %c0_14 = arith.constant 0 : index
    %c0_15 = arith.constant 0 : index
    %35 = vector.load %arg5[%c0_14, %c0_15] : memref<64x128xf32, #tpu.memory_space<vmem>>, vector<64x128xf32>
    tpu.vector_store %arg5[%c0_14, %c0_15], %34 {strides = array<i32>} : memref<64x128xf32, #tpu.memory_space<vmem>>, vector<64x128xf32>,
    return
  }
  func.func @transform_0(%arg0: i32) -> (i32, i32) {
    %c0_i32 = arith.constant 0 : i32
    %c0_i32_0 = arith.constant 0 : i32
    return %arg0, %c0_i32 : i32, i32
  }
  func.func @transform_1(%arg0: i32) -> (i32, i32) {
    %c0_i32 = arith.constant 0 : i32
    %c0_i32_0 = arith.constant 0 : i32
    %c0_i32_1 = arith.constant 0 : i32
    return %c0_i32, %c0_i32_0 : i32, i32
  }
  func.func @transform_2(%arg0: i32) -> (i32, i32) {
    %c0_i32 = arith.constant 0 : i32
    %c0_i32_0 = arith.constant 0 : i32
    %c0_i32_1 = arith.constant 0 : i32
    return %c0_i32, %c0_i32_0 : i32, i32
  }
  func.func @transform_3(%arg0: i32) -> (i32, i32) {
    %c0_i32 = arith.constant 0 : i32
    %c0_i32_0 = arith.constant 0 : i32
    %c0_i32_1 = arith.constant 0 : i32
    return %c0_i32, %c0_i32_0 : i32, i32
  }
  func.func @transform_4(%arg0: i32) -> (i32, i32) {
    %c0_i32 = arith.constant 0 : i32
    %c0_i32_0 = arith.constant 0 : i32
    return %arg0, %c0_i32 : i32, i32
  }
}

</mosaic_0001>

<llo_original>
// kernel: tpu_custom_call.1
$region0: #{tpu_custom_call.1}
  #allocation0 [shape = 'u32[]', space=smem, size = 0x4, offset = 0x4, fixed_abs, tag = 'smem constant byte address 0x4 - core index']
  #allocation1 [shape = 'u32[144,128]{1,0:T(1,128)}', space=vmem, size = 0x12000, scoped, tag = 'internal scratch']
  %s0 = inlined_call_operand.hbm [shape: f32[128,512], index: 0, kind: input, shape index: {}]
  %s1 = inlined_call_operand.vmem [shape: f32[1,128], index: 1, kind: input, shape index: {}]
  %s2 = inlined_call_operand.vmem [shape: f32[1,128], index: 2, kind: input, shape index: {}]
  %s3 = inlined_call_operand.hbm [shape: f32[128,128], index: 3, kind: input, shape index: {}]
  %s4 = inlined_call_operand.hbm [shape: f32[128,128], index: 4, kind: output, shape index: {}]
  %s5 = sld [smem:[#allocation0]]
  $region57: #{tpu_custom_call.1} parent=0
    _
  %s7 = ssub.s32 1, %s5
  %s8 = scalar_select 0, %s7, %s5
  $region1: #{tpu_custom_call.1} parent=0
    #allocation2 [shape = 'u8[262144]{0}', space=vmem, size = 0x40000, scoped, tag = 'input window, operand 0']
    #allocation3 [shape = 's32[2]{0}', space=sflag, size = 0x8, scoped, tag = 'scoped memory for tpu_custom_call.1']
    #allocation4 [shape = 's32[2]{0}', space=sflag, size = 0x8, scoped, tag = 'scoped memory for tpu_custom_call.1']
    #allocation5 [shape = 'u8[65536]{0}', space=vmem, size = 0x10000, scoped, tag = 'input window, operand 3, single buffered']
    #allocation6 [shape = 's32[1]{0}', space=sflag, size = 0x4, scoped, tag = 'scoped memory for tpu_custom_call.1']
    #allocation7 [shape = 'u8[65536]{0}', space=vmem, size = 0x10000, scoped, tag = 'output window, operand 0']
    %9 = vsyncpa [#allocation3], 0
    %s10 = scalar_lea.sflag [#allocation3], 1
    %11 = vsyncpa %s10, 0
    %12 = vsyncpa [#allocation6], 0
    %13 = vsyncpa [#allocation4], 0
    %s14 = scalar_lea.sflag [#allocation4], 1
    %15 = vsyncpa %s14, 0
    loop: start=0, step=1, limit=4
    $region2: #{tpu_custom_call.1} parent=1 // loop_pre_header
      _
    $region3: #{tpu_custom_call.1} parent=1 // loop_header
      %s17 = sphi 0, %s21
      %p18 = scmp.ge.s32.totalorder %s17, 4
      %s27 = sphi 0, %s29
      %s30 = sphi 0, %s27
      %s31 = sphi 0, %s30
      %s47 = sphi 0, %s31
      %s51 = sphi 0, %s51
      %s53 = sphi 0, %s51
      %s54 = sphi 0, %s53
      %s68 = sphi 0, %s54
      %s72 = sphi 0, %s72
      %s74 = sphi 0, %s72
      %s75 = sphi 0, %s74
      %s89 = sphi 0, %s75
      %s93 = sphi 0, %s93
      %s95 = sphi 0, %s93
      %s96 = sphi 0, %s95
      %s110 = sphi 0, %s96
      %s116 = sphi 0, %s118
      %s119 = sphi 0, %s116
      %s120 = sphi 0, %s119
      %s136 = sphi 0, %s120
    $region4: #{tpu_custom_call.1} parent=1 // loop_header_branch
      %20 = sbr.rel (%p18) target = $region8
    $region5: #{tpu_custom_call.1} parent=1 // loop_body
      %s22 = ssub.s32 %s17, 1
      %s23 = ssub.s32 %s17, 2
      %s24 = sadd.s32 %s17, 1
      %s25 = ssub.s32 %s17, %s24
      %p26 = scmp.eq.s32.totalorder %s25, 0
      %s28 = sadd.s32 %s27, 1
      %s29 = scalar_select %p26, %s27, %s28
      %p32 = pneg %p26
      %p33 = scmp.eq.s32.totalorder %s17, 1
      %p34 = por %p32, %p33
      %p35 = scmp.ne.s32.totalorder %s27, %s30
      %p36 = scmp.eq.s32.totalorder %s17, 0
      %p37 = por %p35, %p36
      %p38 = scmp.ne.s32.totalorder %s27, %s30
      %p39 = scmp.eq.s32.totalorder %s22, 1
      %p40 = por %p38, %p39
      %p41 = scmp.ne.s32.totalorder %s30, %s31
      %p42 = scmp.eq.s32.totalorder %s22, 0
      %p43 = por %p41, %p42
      %p44 = scmp.ne.s32.totalorder %s30, %s31
      %p45 = scmp.eq.s32.totalorder %s23, 1
      %p46 = por %p44, %p45
      %p48 = scmp.ne.s32.totalorder %s31, %s47
      %p49 = scmp.eq.s32.totalorder %s23, 0
      %p50 = por %p48, %p49
      %s52 = sadd.s32 %s51, 1
      %p55 = scmp.eq.s32.totalorder %s17, 1
      %p56 = scmp.ne.s32.totalorder %s51, %s53
      %p57 = scmp.eq.s32.totalorder %s17, 0
      %p58 = por %p56, %p57
      %p59 = scmp.ne.s32.totalorder %s51, %s53
      %p60 = scmp.eq.s32.totalorder %s22, 1
      %p61 = por %p59, %p60
      %p62 = scmp.ne.s32.totalorder %s53, %s54
      %p63 = scmp.eq.s32.totalorder %s22, 0
      %p64 = por %p62, %p63
      %p65 = scmp.ne.s32.totalorder %s53, %s54
      %p66 = scmp.eq.s32.totalorder %s23, 1
      %p67 = por %p65, %p66
      %p69 = scmp.ne.s32.totalorder %s54, %s68
      %p70 = scmp.eq.s32.totalorder %s23, 0
      %p71 = por %p69, %p70
      %s73 = sadd.s32 %s72, 1
      %p76 = scmp.eq.s32.totalorder %s17, 1
      %p77 = scmp.ne.s32.totalorder %s72, %s74
      %p78 = scmp.eq.s32.totalorder %s17, 0
      %p79 = por %p77, %p78
      %p80 = scmp.ne.s32.totalorder %s72, %s74
      %p81 = scmp.eq.s32.totalorder %s22, 1
      %p82 = por %p80, %p81
      %p83 = scmp.ne.s32.totalorder %s74, %s75
      %p84 = scmp.eq.s32.totalorder %s22, 0
      %p85 = por %p83, %p84
      %p86 = scmp.ne.s32.totalorder %s74, %s75
      %p87 = scmp.eq.s32.totalorder %s23, 1
      %p88 = por %p86, %p87
      %p90 = scmp.ne.s32.totalorder %s75, %s89
      %p91 = scmp.eq.s32.totalorder %s23, 0
      %p92 = por %p90, %p91
      %s94 = sadd.s32 %s93, 1
      %p97 = scmp.eq.s32.totalorder %s17, 1
      %p98 = scmp.ne.s32.totalorder %s93, %s95
      %p99 = scmp.eq.s32.totalorder %s17, 0
      %p100 = por %p98, %p99
      %p101 = scmp.ne.s32.totalorder %s93, %s95
      %p102 = scmp.eq.s32.totalorder %s22, 1
      %p103 = por %p101, %p102
      %p104 = scmp.ne.s32.totalorder %s95, %s96
      %p105 = scmp.eq.s32.totalorder %s22, 0
      %p106 = por %p104, %p105
      %p107 = scmp.ne.s32.totalorder %s95, %s96
      %p108 = scmp.eq.s32.totalorder %s23, 1
      %p109 = por %p107, %p108
      %p111 = scmp.ne.s32.totalorder %s96, %s110
      %p112 = scmp.eq.s32.totalorder %s23, 0
      %p113 = por %p111, %p112
      %s114 = ssub.s32 %s17, %s24
      %p115 = scmp.eq.s32.totalorder %s114, 0
      %s117 = sadd.s32 %s116, 1
      %s118 = scalar_select %p115, %s116, %s117
      %p121 = pneg %p115
      %p122 = scmp.eq.s32.totalorder %s17, 1
      %p123 = por %p121, %p122
      %p124 = scmp.ne.s32.totalorder %s116, %s119
      %p125 = scmp.eq.s32.totalorder %s17, 0
      %p126 = por %p124, %p125
      %p127 = scmp.ne.s32.totalorder %s116, %s119
      %p128 = scmp.eq.s32.totalorder %s22, 1
      %p129 = por %p127, %p128
      %p130 = scmp.ne.s32.totalorder %s119, %s120
      %p131 = scmp.eq.s32.totalorder %s22, 0
      %p132 = por %p130, %p131
      %p133 = scmp.ne.s32.totalorder %s119, %s120
      %p134 = scmp.eq.s32.totalorder %s23, 1
      %p135 = por %p133, %p134
      %p137 = scmp.ne.s32.totalorder %s120, %s136
      %p138 = scmp.eq.s32.totalorder %s23, 0
      %p139 = por %p137, %p138
      %p140 = scmp.le.s32.totalorder 1, %s17
      %p141 = scmp.lt.s32.totalorder %s17, 3
      %p142 = pnand %p140, %p141
      %p143 = pneg %p142
      // Predicated region
      $region9: #{tpu_custom_call.1} parent=5 // pred_check
        _
      $region10: #{tpu_custom_call.1} parent=5 // pred_check_branch
        %145 = sbr.rel (%p142) target = $region12
      $region11: #{tpu_custom_call.1} parent=5 // pred_region
        %s146 = ssub.s32 %s17, 1
        // Predicated region
        $region13: #{tpu_custom_call.1} parent=11 // pred_check
          %p147 = pneg %p64
        $region14: #{tpu_custom_call.1} parent=11 // pred_check_branch
          %149 = sbr.rel (%p147) target = $region16
        $region15: #{tpu_custom_call.1} parent=11 // pred_region
          _
        $region16: #{tpu_custom_call.1} parent=11 // pred_fallthru
          _
        // Predicated region
        $region17: #{tpu_custom_call.1} parent=11 // pred_check
          %p150 = pneg %p85
        $region18: #{tpu_custom_call.1} parent=11 // pred_check_branch
          %152 = sbr.rel (%p150) target = $region20
        $region19: #{tpu_custom_call.1} parent=11 // pred_region
          _
        $region20: #{tpu_custom_call.1} parent=11 // pred_fallthru
          _
        // Predicated region
        $region21: #{tpu_custom_call.1} parent=11 // pred_check
          %p153 = pneg %p106
        $region22: #{tpu_custom_call.1} parent=11 // pred_check_branch
          %155 = sbr.rel (%p153) target = $region24
        $region23: #{tpu_custom_call.1} parent=11 // pred_region
          %s157 = ssub.s32 2048, 2048
          %158 = vsyncadd [#allocation6], %s157
          %s159 = sshll.u32 [#allocation5], 4
          %s160 = int_to_ptr.vmem [resolvable:$true] %s159
          %165 = dma.hbm_to_vmem [thread:$0]  %s3, 2048, %s160, [#allocation6], 128, 128, 8
        $region24: #{tpu_custom_call.1} parent=11 // pred_fallthru
          _
      $region12: #{tpu_custom_call.1} parent=5 // pred_fallthru
        _
      %p166 = scmp.lt.s32.totalorder %s17, 2
      // Predicated region
      $region25: #{tpu_custom_call.1} parent=5 // pred_check
        %p167 = pneg %p166
      $region26: #{tpu_custom_call.1} parent=5 // pred_check_branch
        %169 = sbr.rel (%p167) target = $region28
      $region27: #{tpu_custom_call.1} parent=5 // pred_region
        // Predicated region
        $region29: #{tpu_custom_call.1} parent=27 // pred_check
          %p170 = pneg %p37
        $region30: #{tpu_custom_call.1} parent=27 // pred_check_branch
          %172 = sbr.rel (%p170) target = $region32
        $region31: #{tpu_custom_call.1} parent=27 // pred_region
          %s173 = sand.u32 %s27, 1
          %s174 = scalar_lea.sflag [#allocation3], %s173
          %s175 = sand.u32 %s27, 1
          %s176 = smul.addr %s175, 256
          %s177 = scalar_lea.vmem [#allocation2], %s176
          %s178 = smul.u32 8, %s17
          %s180 = ssub.s32 4096, 4096
          %181 = vsyncadd %s174, %s180
          %s182 = smul.addr %s178, 4
          %s183 = smul.addr %s182, 128
          %s184 = scalar_lea.hbm %s0, %s183
          %s185 = sshll.u32 %s177, 4
          %s186 = int_to_ptr.vmem [resolvable:$true] %s185
          %191 = dma.hbm_to_vmem [thread:$0]  %s184, 4096, %s186, %s174, 512, 512, 32
        $region32: #{tpu_custom_call.1} parent=27 // pred_fallthru
          _
      $region28: #{tpu_custom_call.1} parent=5 // pred_fallthru
        _
      %p192 = scmp.le.s32.totalorder 1, %s17
      %p193 = scmp.lt.s32.totalorder %s17, 3
      %p194 = pnand %p192, %p193
      %p195 = pneg %p194
      // Predicated region
      $region33: #{tpu_custom_call.1} parent=5 // pred_check
        _
      $region34: #{tpu_custom_call.1} parent=5 // pred_check_branch
        %197 = sbr.rel (%p194) target = $region36
      $region35: #{tpu_custom_call.1} parent=5 // pred_region
        %s198 = ssub.s32 %s17, 1
        %s199 = sand.u32 %s30, 1
        %s200 = scalar_lea.sflag [#allocation3], %s199
        %s201 = sand.u32 %s30, 1
        %s202 = smul.addr %s201, 256
        %s203 = scalar_lea.vmem [#allocation2], %s202
        // Predicated region
        $region37: #{tpu_custom_call.1} parent=35 // pred_check
          %p204 = pneg %p43
        $region38: #{tpu_custom_call.1} parent=35 // pred_check_branch
          %206 = sbr.rel (%p204) target = $region40
        $region39: #{tpu_custom_call.1} parent=35 // pred_region
          %207 = dma.done %s200, 4096
        $region40: #{tpu_custom_call.1} parent=35 // pred_fallthru
          _
        // Predicated region
        $region41: #{tpu_custom_call.1} parent=35 // pred_check
          %p208 = pneg %p106
        $region42: #{tpu_custom_call.1} parent=35 // pred_check_branch
          %210 = sbr.rel (%p208) target = $region44
        $region43: #{tpu_custom_call.1} parent=35 // pred_region
          %211 = dma.done [#allocation6], 2048
        $region44: #{tpu_custom_call.1} parent=35 // pred_fallthru
          _
        %s212 = sand.u32 %s30, 1
        %s213 = scalar_lea.sflag [#allocation3], %s212
        %s214 = sand.u32 %s30, 1
        %s215 = smul.addr %s214, 256
        %s216 = scalar_lea.vmem [#allocation2], %s215
        %p217 = pneg %p43
        %p218 = pneg %p40
        %p219 = pneg %p64
        %p220 = pneg %p61
        %p221 = pneg %p85
        %p222 = pneg %p82
        %p223 = pneg %p106
        %p224 = pneg %p103
        %p225 = pneg %p132
        %p226 = pneg %p129
        %s227 = sand.u32 %s119, 1
        %s228 = scalar_lea.sflag [#allocation4], %s227
        %s229 = sand.u32 %s119, 1
        %s230 = smul.addr %s229, 64
        %s231 = scalar_lea.vmem [#allocation7], %s230
        %s232 = smul.u32 8, %s22
        %s233 = smul.u32 8, %s22
        %v234 = vld [vmem:[%s1] sm:$0x1]
        %v235 = vld [vmem:[%s2] sm:$0x1]
        %v236 = vld [vmem:[%s203] sm:$0xff]
        %v237 = vld [vmem:[%s203 + $0x20] sm:$0xff]
        %v238 = vld [vmem:[%s203 + $0x40] sm:$0xff]
        %v239 = vld [vmem:[%s203 + $0x60] sm:$0xff]
        %v240 = vld [vmem:[%s203 + $0x80] sm:$0xff]
        %v241 = vld [vmem:[%s203 + $0xa0] sm:$0xff]
        %v242 = vld [vmem:[%s203 + $0xc0] sm:$0xff]
        %v243 = vld [vmem:[%s203 + $0xe0] sm:$0xff]
        %v245 = vlaneseq
        %v246 = vshrl.u32 %v245, 7
        %v247 = vsub.s32 0, %v246
        %v248 = vrot.slane %v234, %v247
        %v250 = vmul.f32 %v236, %v248
        %v251 = vmul.f32 %v237, %v248
        %v252 = vmul.f32 %v238, %v248
        %v253 = vmul.f32 %v239, %v248
        %v254 = vmul.f32 %v240, %v248
        %v255 = vmul.f32 %v241, %v248
        %v256 = vmul.f32 %v242, %v248
        %v257 = vmul.f32 %v243, %v248
        %v259 = vlaneseq
        %v260 = vshrl.u32 %v259, 7
        %v261 = vsub.s32 0, %v260
        %v262 = vrot.slane %v235, %v261
        %v264 = vadd.f32 %v250, %v262
        %v265 = vadd.f32 %v251, %v262
        %v266 = vadd.f32 %v252, %v262
        %v267 = vadd.f32 %v253, %v262
        %v268 = vadd.f32 %v254, %v262
        %v269 = vadd.f32 %v255, %v262
        %v270 = vadd.f32 %v256, %v262
        %v271 = vadd.f32 %v257, %v262
        %v272 = vmax.f32 %v264, 0.0
        %v273 = vmax.f32 %v265, 0.0
        %v274 = vmax.f32 %v266, 0.0
        %v275 = vmax.f32 %v267, 0.0
        %v276 = vmax.f32 %v268, 0.0
        %v277 = vmax.f32 %v269, 0.0
        %v278 = vmax.f32 %v270, 0.0
        %v279 = vmax.f32 %v271, 0.0
        %v280 = vld [vmem:[%s203 + $0x8] sm:$0xff]
        %v281 = vld [vmem:[%s203 + $0x28] sm:$0xff]
        %v282 = vld [vmem:[%s203 + $0x48] sm:$0xff]
        %v283 = vld [vmem:[%s203 + $0x68] sm:$0xff]
        %v284 = vld [vmem:[%s203 + $0x88] sm:$0xff]
        %v285 = vld [vmem:[%s203 + $0xa8] sm:$0xff]
        %v286 = vld [vmem:[%s203 + $0xc8] sm:$0xff]
        %v287 = vld [vmem:[%s203 + $0xe8] sm:$0xff]
        %v288 = vmul.f32 %v280, %v248
        %v289 = vmul.f32 %v281, %v248
        %v290 = vmul.f32 %v282, %v248
        %v291 = vmul.f32 %v283, %v248
        %v292 = vmul.f32 %v284, %v248
        %v293 = vmul.f32 %v285, %v248
        %v294 = vmul.f32 %v286, %v248
        %v295 = vmul.f32 %v287, %v248
        %v296 = vadd.f32 %v288, %v262
        %v297 = vadd.f32 %v289, %v262
        %v298 = vadd.f32 %v290, %v262
        %v299 = vadd.f32 %v291, %v262
        %v300 = vadd.f32 %v292, %v262
        %v301 = vadd.f32 %v293, %v262
        %v302 = vadd.f32 %v294, %v262
        %v303 = vadd.f32 %v295, %v262
        %v304 = vmax.f32 %v296, 0.0
        %v305 = vmax.f32 %v297, 0.0
        %v306 = vmax.f32 %v298, 0.0
        %v307 = vmax.f32 %v299, 0.0
        %v308 = vmax.f32 %v300, 0.0
        %v309 = vmax.f32 %v301, 0.0
        %v310 = vmax.f32 %v302, 0.0
        %v311 = vmax.f32 %v303, 0.0
        %v312 = vadd.f32 %v272, %v304
        %v313 = vadd.f32 %v273, %v305
        %v314 = vadd.f32 %v274, %v306
        %v315 = vadd.f32 %v275, %v307
        %v316 = vadd.f32 %v276, %v308
        %v317 = vadd.f32 %v277, %v309
        %v318 = vadd.f32 %v278, %v310
        %v319 = vadd.f32 %v279, %v311
        %v320 = vld [vmem:[%s203 + $0x10] sm:$0xff]
        %v321 = vld [vmem:[%s203 + $0x30] sm:$0xff]
        %v322 = vld [vmem:[%s203 + $0x50] sm:$0xff]
        %v323 = vld [vmem:[%s203 + $0x70] sm:$0xff]
        %v324 = vld [vmem:[%s203 + $0x90] sm:$0xff]
        %v325 = vld [vmem:[%s203 + $0xb0] sm:$0xff]
        %v326 = vld [vmem:[%s203 + $0xd0] sm:$0xff]
        %v327 = vld [vmem:[%s203 + $0xf0] sm:$0xff]
        %v328 = vmul.f32 %v320, %v248
        %v329 = vmul.f32 %v321, %v248
        %v330 = vmul.f32 %v322, %v248
        %v331 = vmul.f32 %v323, %v248
        %v332 = vmul.f32 %v324, %v248
        %v333 = vmul.f32 %v325, %v248
        %v334 = vmul.f32 %v326, %v248
        %v335 = vmul.f32 %v327, %v248
        %v336 = vadd.f32 %v328, %v262
        %v337 = vadd.f32 %v329, %v262
        %v338 = vadd.f32 %v330, %v262
        %v339 = vadd.f32 %v331, %v262
        %v340 = vadd.f32 %v332, %v262
        %v341 = vadd.f32 %v333, %v262
        %v342 = vadd.f32 %v334, %v262
        %v343 = vadd.f32 %v335, %v262
        %v344 = vmax.f32 %v336, 0.0
        %v345 = vmax.f32 %v337, 0.0
        %v346 = vmax.f32 %v338, 0.0
        %v347 = vmax.f32 %v339, 0.0
        %v348 = vmax.f32 %v340, 0.0
        %v349 = vmax.f32 %v341, 0.0
        %v350 = vmax.f32 %v342, 0.0
        %v351 = vmax.f32 %v343, 0.0
        %v352 = vadd.f32 %v312, %v344
        %v353 = vadd.f32 %v313, %v345
        %v354 = vadd.f32 %v314, %v346
        %v355 = vadd.f32 %v315, %v347
        %v356 = vadd.f32 %v316, %v348
        %v357 = vadd.f32 %v317, %v349
        %v358 = vadd.f32 %v318, %v350
        %v359 = vadd.f32 %v319, %v351
        %v360 = vld [vmem:[%s203 + $0x18] sm:$0xff]
        %v361 = vld [vmem:[%s203 + $0x38] sm:$0xff]
        %v362 = vld [vmem:[%s203 + $0x58] sm:$0xff]
        %v363 = vld [vmem:[%s203 + $0x78] sm:$0xff]
        %v364 = vld [vmem:[%s203 + $0x98] sm:$0xff]
        %v365 = vld [vmem:[%s203 + $0xb8] sm:$0xff]
        %v366 = vld [vmem:[%s203 + $0xd8] sm:$0xff]
        %v367 = vld [vmem:[%s203 + $0xf8] sm:$0xff]
        %v368 = vmul.f32 %v360, %v248
        %v369 = vmul.f32 %v361, %v248
        %v370 = vmul.f32 %v362, %v248
        %v371 = vmul.f32 %v363, %v248
        %v372 = vmul.f32 %v364, %v248
        %v373 = vmul.f32 %v365, %v248
        %v374 = vmul.f32 %v366, %v248
        %v375 = vmul.f32 %v367, %v248
        %v376 = vadd.f32 %v368, %v262
        %v377 = vadd.f32 %v369, %v262
        %v378 = vadd.f32 %v370, %v262
        %v379 = vadd.f32 %v371, %v262
        %v380 = vadd.f32 %v372, %v262
        %v381 = vadd.f32 %v373, %v262
        %v382 = vadd.f32 %v374, %v262
        %v383 = vadd.f32 %v375, %v262
        %v384 = vmax.f32 %v376, 0.0
        %v385 = vmax.f32 %v377, 0.0
        %v386 = vmax.f32 %v378, 0.0
        %v387 = vmax.f32 %v379, 0.0
        %v388 = vmax.f32 %v380, 0.0
        %v389 = vmax.f32 %v381, 0.0
        %v390 = vmax.f32 %v382, 0.0
        %v391 = vmax.f32 %v383, 0.0
        %v392 = vadd.f32 %v352, %v384
        %v393 = vadd.f32 %v353, %v385
        %v394 = vadd.f32 %v354, %v386
        %v395 = vadd.f32 %v355, %v387
        %v396 = vadd.f32 %v356, %v388
        %v397 = vadd.f32 %v357, %v389
        %v398 = vadd.f32 %v358, %v390
        %v399 = vadd.f32 %v359, %v391
        %v400 = vld [vmem:[#allocation5] sm:$0xff]
        %v401 = vld [vmem:[#allocation5 + $0x8] sm:$0xff]
        %v402 = vld [vmem:[#allocation5 + $0x10] sm:$0xff]
        %v403 = vld [vmem:[#allocation5 + $0x18] sm:$0xff]
        %v404 = vld [vmem:[#allocation5 + $0x20] sm:$0xff]
        %v405 = vld [vmem:[#allocation5 + $0x28] sm:$0xff]
        %v406 = vld [vmem:[#allocation5 + $0x30] sm:$0xff]
        %v407 = vld [vmem:[#allocation5 + $0x38] sm:$0xff]
        %v408 = vld [vmem:[#allocation5 + $0x40] sm:$0xff]
        %v409 = vld [vmem:[#allocation5 + $0x48] sm:$0xff]
        %v410 = vld [vmem:[#allocation5 + $0x50] sm:$0xff]
        %v411 = vld [vmem:[#allocation5 + $0x58] sm:$0xff]
        %v412 = vld [vmem:[#allocation5 + $0x60] sm:$0xff]
        %v413 = vld [vmem:[#allocation5 + $0x68] sm:$0xff]
        %v414 = vld [vmem:[#allocation5 + $0x70] sm:$0xff]
        %v415 = vld [vmem:[#allocation5 + $0x78] sm:$0xff]
        %416 = vmatprep.subr.mxu0 0.0
        %417 = vmatpush1.msra.mxu0 %v400
        %418 = vmatprep.subr.mxu0 0.0
        %419 = vmatpush1.msra.mxu0 %v401
        %420 = vmatprep.subr.mxu0 0.0
        %421 = vmatpush1.msra.mxu0 %v402
        %422 = vmatprep.subr.mxu0 0.0
        %423 = vmatpush1.msra.mxu0 %v403
        %424 = vmatprep.subr.mxu0 0.0
        %425 = vmatpush1.msra.mxu0 %v404
        %426 = vmatprep.subr.mxu0 0.0
        %427 = vmatpush1.msra.mxu0 %v405
        %428 = vmatprep.subr.mxu0 0.0
        %429 = vmatpush1.msra.mxu0 %v406
        %430 = vmatprep.subr.mxu0 0.0
        %431 = vmatpush1.msra.mxu0 %v407
        %432 = vmatprep.subr.mxu0 0.0
        %433 = vmatpush1.msra.mxu0 %v408
        %434 = vmatprep.subr.mxu0 0.0
        %435 = vmatpush1.msra.mxu0 %v409
        %436 = vmatprep.subr.mxu0 0.0
        %437 = vmatpush1.msra.mxu0 %v410
        %438 = vmatprep.subr.mxu0 0.0
        %439 = vmatpush1.msra.mxu0 %v411
        %440 = vmatprep.subr.mxu0 0.0
        %441 = vmatpush1.msra.mxu0 %v412
        %442 = vmatprep.subr.mxu0 0.0
        %443 = vmatpush1.msra.mxu0 %v413
        %444 = vmatprep.subr.mxu0 0.0
        %445 = vmatpush1.msra.mxu0 %v414
        %446 = vmatprep.subr.mxu0 0.0
        %447 = vmatpush1.msra.mxu0 %v415
        %448 = vmatprep.subr.mxu0 0.0
        %449 = vmatpush1.msra.mxu0 0.0
        %450 = vmatprep.subr.mxu0 0.0
        %451 = vmatpush1.msra.mxu0 0.0
        %452 = vmatprep.subr.mxu0 0.0
        %453 = vmatpush1.msra.mxu0 0.0
        %454 = vmatprep.subr.mxu0 0.0
        %455 = vmatpush1.msra.mxu0 0.0
        %456 = vmatprep.subr.mxu0 0.0
        %457 = vmatpush1.msra.mxu0 0.0
        %458 = vmatprep.subr.mxu0 0.0
        %459 = vmatpush1.msra.mxu0 0.0
        %460 = vmatprep.subr.mxu0 0.0
        %461 = vmatpush1.msra.mxu0 0.0
        %462 = vmatprep.subr.mxu0 0.0
        %463 = vmatpush1.msra.mxu0 0.0
        %464 = vmatprep.subr.mxu0 0.0
        %465 = vmatpush1.msra.mxu0 0.0
        %466 = vmatprep.subr.mxu0 0.0
        %467 = vmatpush1.msra.mxu0 0.0
        %468 = vmatprep.subr.mxu0 0.0
        %469 = vmatpush1.msra.mxu0 0.0
        %470 = vmatprep.subr.mxu0 0.0
        %471 = vmatpush1.msra.mxu0 0.0
        %472 = vmatprep.subr.mxu0 0.0
        %473 = vmatpush1.msra.mxu0 0.0
        %474 = vmatprep.subr.mxu0 0.0
        %475 = vmatpush1.msra.mxu0 0.0
        %476 = vmatprep.subr.mxu0 0.0
        %477 = vmatpush1.msra.mxu0 0.0
        %478 = vmatprep.subr.mxu0 0.0
        %479 = vmatpush1.msra.mxu0 0.0
        %480 = vmatprep.mubr.f32.mxu0 0.0
        %481 = vmatmul.mubr.f32.gmra.mrb[0].mxu0 %v392
        %v482 = vpop.f32.mrb[0].mxu0
        %v483 = vadd.f32 0.0, %v482
        %v484 = vpop.f32.mrb[0].mxu0
        %485 = vmatprep.mubr.f32.mxu0 0.0
        %486 = vmatmul.mubr.f32.gmra.mrb[0].mxu0 %v393
        %v487 = vpop.f32.mrb[0].mxu0
        %v488 = vadd.f32 0.0, %v487
        %v489 = vpop.f32.mrb[0].mxu0
        %490 = vmatprep.mubr.f32.mxu0 0.0
        %491 = vmatmul.mubr.f32.gmra.mrb[0].mxu0 %v394
        %v492 = vpop.f32.mrb[0].mxu0
        %v493 = vadd.f32 0.0, %v492
        %v494 = vpop.f32.mrb[0].mxu0
        %495 = vmatprep.mubr.f32.mxu0 0.0
        %496 = vmatmul.mubr.f32.gmra.mrb[0].mxu0 %v395
        %v497 = vpop.f32.mrb[0].mxu0
        %v498 = vadd.f32 0.0, %v497
        %v499 = vpop.f32.mrb[0].mxu0
        %500 = vmatprep.mubr.f32.mxu0 0.0
        %501 = vmatmul.mubr.f32.gmra.mrb[0].mxu0 %v396
        %v502 = vpop.f32.mrb[0].mxu0
        %v503 = vadd.f32 0.0, %v502
        %v504 = vpop.f32.mrb[0].mxu0
        %505 = vmatprep.mubr.f32.mxu0 0.0
        %506 = vmatmul.mubr.f32.gmra.mrb[0].mxu0 %v397
        %v507 = vpop.f32.mrb[0].mxu0
        %v508 = vadd.f32 0.0, %v507
        %v509 = vpop.f32.mrb[0].mxu0
        %510 = vmatprep.mubr.f32.mxu0 0.0
        %511 = vmatmul.mubr.f32.gmra.mrb[0].mxu0 %v398
        %v512 = vpop.f32.mrb[0].mxu0
        %v513 = vadd.f32 0.0, %v512
        %v514 = vpop.f32.mrb[0].mxu0
        %515 = vmatprep.mubr.f32.mxu0 0.0
        %516 = vmatmul.mubr.f32.gmra.mrb[0].mxu0 %v399
        %v517 = vpop.f32.mrb[0].mxu0
        %v518 = vadd.f32 0.0, %v517
        %v519 = vpop.f32.mrb[0].mxu0
        %520 = vdwg.mxu0
        %521 = vst [vmem:[%s231] sm:$0xff] %v483
        %522 = vst [vmem:[%s231 + $0x8] sm:$0xff] %v488
        %523 = vst [vmem:[%s231 + $0x10] sm:$0xff] %v493
        %524 = vst [vmem:[%s231 + $0x18] sm:$0xff] %v498
        %525 = vst [vmem:[%s231 + $0x20] sm:$0xff] %v503
        %526 = vst [vmem:[%s231 + $0x28] sm:$0xff] %v508
        %527 = vst [vmem:[%s231 + $0x30] sm:$0xff] %v513
        %528 = vst [vmem:[%s231 + $0x38] sm:$0xff] %v518
        %s529 = sand.u32 %s119, 1
        %s530 = scalar_lea.sflag [#allocation4], %s529
        %s531 = sand.u32 %s119, 1
        %s532 = smul.addr %s531, 64
        %s533 = scalar_lea.vmem [#allocation7], %s532
        // Predicated region
        $region45: #{tpu_custom_call.1} parent=35 // pred_check
          %p534 = pneg %p129
        $region46: #{tpu_custom_call.1} parent=35 // pred_check_branch
          %536 = sbr.rel (%p534) target = $region48
        $region47: #{tpu_custom_call.1} parent=35 // pred_region
          %s537 = smul.u32 8, %s22
          %s539 = ssub.s32 1024, 1024
          %540 = vsyncadd %s530, %s539
          %s541 = smul.addr %s537, 128
          %s542 = scalar_lea.hbm %s4, %s541
          %s543 = sshll.u32 %s533, 4
          %s544 = int_to_ptr.vmem [resolvable:$true] %s543
          %549 = dma.vmem_to_hbm [thread:$0]  %s544, 1024, %s542, %s530, 128, 128, 8
        $region48: #{tpu_custom_call.1} parent=35 // pred_fallthru
          _
      $region36: #{tpu_custom_call.1} parent=5 // pred_fallthru
        _
      %p550 = scmp.le.s32.totalorder 2, %s17
      // Predicated region
      $region49: #{tpu_custom_call.1} parent=5 // pred_check
        %p551 = pneg %p550
      $region50: #{tpu_custom_call.1} parent=5 // pred_check_branch
        %553 = sbr.rel (%p551) target = $region52
      $region51: #{tpu_custom_call.1} parent=5 // pred_region
        %s554 = ssub.s32 %s17, 2
        // Predicated region
        $region53: #{tpu_custom_call.1} parent=51 // pred_check
          %p555 = pneg %p135
        $region54: #{tpu_custom_call.1} parent=51 // pred_check_branch
          %557 = sbr.rel (%p555) target = $region56
        $region55: #{tpu_custom_call.1} parent=51 // pred_region
          %s558 = sand.u32 %s120, 1
          %s559 = scalar_lea.sflag [#allocation4], %s558
          %s560 = sand.u32 %s120, 1
          %s561 = smul.addr %s560, 64
          %s562 = scalar_lea.vmem [#allocation7], %s561
          %563 = dma.done %s559, 1024
        $region56: #{tpu_custom_call.1} parent=51 // pred_fallthru
          _
      $region52: #{tpu_custom_call.1} parent=5 // pred_fallthru
        _
    $region6: #{tpu_custom_call.1} parent=1 // loop_footer
      %s21 = sadd.s32 1, %s17
    $region7: #{tpu_custom_call.1} parent=1 // loop_footer_branch
      %16 = sbr.rel target = $region3
    $region8: #{tpu_custom_call.1} parent=1 // loop_exit
      _
    %564 = vsyncpa [#allocation3], 1
    %s565 = scalar_lea.sflag [#allocation3], 1
    %566 = vsyncpa %s565, 1
    %567 = vsyncpa [#allocation6], 1
    %568 = vsyncpa [#allocation4], 1
    %s569 = scalar_lea.sflag [#allocation4], 1
    %570 = vsyncpa %s569, 1

</llo_original>
